<compile_context>
chip_gen: v5e
topology: v5e:2x2
jax: 0.10.0
libtpu: 0.0.40
codegen_flags: <defaults>
</compile_context>

<pallas_src>
import jax
import jax.numpy as jnp
from jax.experimental import pallas as pl
from jax.experimental.pallas import tpu as pltpu


def _inv1x1_dense_kernel(x_ref, wt_ref, o_ref):
    # y_tile = x_tile @ W^T. W^T was pre-transposed in the wrapper, so this is a
    # straight (rows x cols) MXU contraction with f32 accumulation.
    y = jnp.dot(x_ref[...], wt_ref[...], preferred_element_type=jnp.float32)
    o_ref[...] = y.astype(o_ref.dtype)


def _round_up(x, m):
    return (x + m - 1) // m * m


def invertible_1x1_dense_forward(x, W, *, tm=None, tn=None, compute_dtype=None):
    """Pallas implementation of Invertible1x1AsDenseLayer.forward(x, inverse=False).

    Computes y = x @ W.T  (== F.linear(x, W, bias=None)).

    Args:
      x: (B, D) activations, feature axis last (lane axis on TPU).
      W: (D, D) weight, PyTorch convention (contracted against its 2nd axis).
      tm: row tile (defaults to min(512, round_up(B, sublane))).
      tn: output-feature tile (defaults to full D; tiled for very large D).
      compute_dtype: optional lower-precision I/O dtype (e.g. jnp.bfloat16) for
        bandwidth-bound cases; accumulation stays f32 inside the kernel.
    """
    B, D = x.shape
    assert W.shape == (D, D)
    out_dtype = x.dtype

    if compute_dtype is not None:
        x = x.astype(compute_dtype)
        W = W.astype(compute_dtype)

    itemsize = jnp.dtype(x.dtype).itemsize
    sublane = max(8, 32 // itemsize)          # 8 rows for f32, 16 for bf16

    # Large row tile: approaches the HBM roofline and amortizes the ~0.35us
    # per-grid-step overhead; keep it a multiple of the sublane packing.
    if tm is None:
        tm = min(512, _round_up(B, sublane))
    tm = _round_up(tm, sublane)

    # Output-feature tile: full D for typical widths; tile for huge D so the
    # resident weight block stays well inside VMEM (v7x has only 64 MiB).
    if tn is None:
        tn = 512 if (D > 2048 and D % 512 == 0) else D

    # Pre-transpose once in XLA (tiny DxD op): the kernel then contracts W^T's
    # leading axis directly -- no per-grid-step in-kernel transpose of W.
    wt = W.T  # (D, D);  y = x @ wt

    # cdiv-style grid: pad the batch, slice the padding back off afterwards.
    Bp = _round_up(B, tm)
    if Bp != B:
        x = jnp.pad(x, ((0, Bp - B), (0, 0)))

    grid = (Bp // tm, D // tn)

    cost = pl.CostEstimate(
        flops=2 * B * D * D,
        transcendentals=0,
        bytes_accessed=(2 * B * D + D * D) * itemsize,
    )

    # Bump the scoped-VMEM limit only when the double-buffered working set
    # actually needs it (keeps defaults for small shapes / small-VMEM chips).
    vmem_bytes = 2 * (tm * D + D * tn + tm * tn) * max(itemsize, 4)
    compiler_kwargs = {}
    if vmem_bytes > 16 * 1024 * 1024:
        compiler_kwargs["vmem_limit_bytes"] = min(int(vmem_bytes * 1.5),
                                                  100 * 1024 * 1024)
    # TODO(synk): for very large D on v7x, single-buffering the constant weight
    # block (pipeline_mode=pl.Buffered(1)) would halve its VMEM footprint; left
    # out here to stay on the widely-supported default pipelining path.

    y = pl.pallas_call(
        _inv1x1_dense_kernel,
        out_shape=jax.ShapeDtypeStruct((Bp, D), out_dtype),
        grid_spec=pltpu.PrefetchScalarGridSpec(
            num_scalar_prefetch=0,
            grid=grid,
            in_specs=[
                pl.BlockSpec((tm, D), lambda i, j: (i, 0)),   # x row tile (full K)
                pl.BlockSpec((D, tn), lambda i, j: (0, j)),   # W^T column tile
            ],
            out_specs=pl.BlockSpec((tm, tn), lambda i, j: (i, j)),
        ),
        compiler_params=pltpu.CompilerParams(
            dimension_semantics=("parallel", "parallel"),
            **compiler_kwargs,
        ),
        cost_estimate=cost,
    )(x, wt)

    if Bp != B:
        y = y[:B]
    return y


def init_params(key, data_dim, dtype=jnp.float32):
    """Deterministic orthogonal init, mirroring torch.qr(torch.randn(D, D))[0]."""
    w_rand = jax.random.normal(key, (data_dim, data_dim), dtype=jnp.float32)
    W, _ = jnp.linalg.qr(w_rand)
    return W.astype(dtype)
    # TODO(synk): LU_decomposed=True parameterization (P,L,U,s), the logdet
    # scalar (log|det W|), and the decode/inverse path (torch.inverse) are
    # parameter/glue math; the hot path (x @ W^T) is identical, so only the
    # forward matmul is lowered to Pallas here.


if __name__ == "__main__":
    key = jax.random.PRNGKey(0)
    k_w, k_x = jax.random.split(key)

    batch, data_dim = 16, 128
    W = init_params(k_w, data_dim)
    x = jax.random.normal(k_x, (batch, data_dim), dtype=jnp.float32)

    y = jax.block_until_ready(invertible_1x1_dense_forward(x, W))
    y_ref = x @ W.T                       # F.linear(x, W, bias=None)
    assert y.shape == (batch, data_dim)
    assert jnp.allclose(y, y_ref, atol=1e-4, rtol=1e-4), "mismatch vs reference"

    # Ragged-batch path (cdiv grid + zero padding, padding sliced off).
    x2 = jax.random.normal(jax.random.PRNGKey(2), (12, data_dim), dtype=jnp.float32)
    y2 = jax.block_until_ready(invertible_1x1_dense_forward(x2, W))
    assert y2.shape == (12, data_dim)
    assert jnp.allclose(y2, x2 @ W.T, atol=1e-4, rtol=1e-4), "ragged mismatch"

    print("KERNEL_OK")
</pallas_src>

<mosaic_0001>
module attributes {stable_mosaic.version = 11 : i64} {
  func.func @_inv1x1_dense_kernel(%arg0: i32, %arg1: i32, %arg2: memref<16x128xf32, #tpu.memory_space<vmem>>, %arg3: memref<128x128xf32, #tpu.memory_space<vmem>>, %arg4: memref<16x128xf32, #tpu.memory_space<vmem>>) attributes {dimension_semantics = [#tpu.dimension_semantics<parallel>, #tpu.dimension_semantics<parallel>], iteration_bounds = array<i64: 1, 1>, scalar_prefetch = 0 : i64, scratch_operands = 0 : i64, tpu.core_type = #tpu.core_type<tc>, window_params = [{transform_indices = @transform_0, window_bounds = array<i64: 16, 128>}, {transform_indices = @transform_1, window_bounds = array<i64: 128, 128>}, {transform_indices = @transform_2, window_bounds = array<i64: 16, 128>}]} {
    %c0 = arith.constant 0 : index
    %c0_0 = arith.constant 0 : index
    %0 = vector.load %arg2[%c0, %c0_0] : memref<16x128xf32, #tpu.memory_space<vmem>>, vector<16x128xf32>
    %c0_1 = arith.constant 0 : index
    %c0_2 = arith.constant 0 : index
    %1 = vector.load %arg3[%c0_1, %c0_2] : memref<128x128xf32, #tpu.memory_space<vmem>>, vector<128x128xf32>
    %cst = arith.constant dense<0.000000e+00> : vector<16x128xf32>
    %2 = tpu.matmul %0, %1, %cst {dimension_numbers = #tpu.dot_dimension_numbers<[1], [0], [0], [1], [0, 0, 1, 1], [], []>} : vector<16x128xf32>, vector<128x128xf32>, vector<16x128xf32> -> vector<16x128xf32>
    %c0_3 = arith.constant 0 : index
    %c0_4 = arith.constant 0 : index
    %3 = vector.load %arg4[%c0_3, %c0_4] : memref<16x128xf32, #tpu.memory_space<vmem>>, vector<16x128xf32>
    tpu.vector_store %arg4[%c0_3, %c0_4], %2 {strides = array<i32>} : memref<16x128xf32, #tpu.memory_space<vmem>>, vector<16x128xf32>,
    return
  }
  func.func @transform_0(%arg0: i32, %arg1: i32) -> (i32, i32) {
    %c0_i32 = arith.constant 0 : i32
    %c0_i32_0 = arith.constant 0 : i32
    return %arg0, %c0_i32 : i32, i32
  }
  func.func @transform_1(%arg0: i32, %arg1: i32) -> (i32, i32) {
    %c0_i32 = arith.constant 0 : i32
    %c0_i32_0 = arith.constant 0 : i32
    return %c0_i32, %arg1 : i32, i32
  }
  func.func @transform_2(%arg0: i32, %arg1: i32) -> (i32, i32) {
    %c0_i32 = arith.constant 0 : i32
    return %arg0, %arg1 : i32, i32
  }
}

</mosaic_0001>

<llo_original>
// kernel: tpu_custom_call.1
$region0: #{tpu_custom_call.1}
  #allocation0 [shape = 'u32[]', space=smem, size = 0x4, offset = 0x4, fixed_abs, tag = 'smem constant byte address 0x4 - core index']
  #allocation1 [shape = 'u32[72,128]{1,0:T(1,128)}', space=vmem, size = 0x9000, scoped, tag = 'internal scratch']
  %s0 = inlined_call_operand.hbm [shape: f32[16,128], index: 0, kind: input, shape index: {}]
  %s1 = inlined_call_operand.hbm [shape: f32[128,128], index: 1, kind: input, shape index: {}]
  %s2 = inlined_call_operand.hbm [shape: f32[16,128], index: 2, kind: output, shape index: {}]
  %s3 = sld [smem:[#allocation0]]
  $region26: #{tpu_custom_call.1} parent=0
    _
  %s5 = ssub.s32 1, %s3
  %s6 = scalar_select 0, %s5, %s3
  $region1: #{tpu_custom_call.1} parent=0
    #allocation2 [shape = 'u8[8192]{0}', space=vmem, size = 0x2000, scoped, tag = 'input window, operand 0, single buffered']
    #allocation3 [shape = 's32[1]{0}', space=sflag, size = 0x4, scoped, tag = 'scoped memory for tpu_custom_call.1']
    #allocation4 [shape = 's32[1]{0}', space=sflag, size = 0x4, scoped, tag = 'scoped memory for tpu_custom_call.1']
    #allocation5 [shape = 'u8[65536]{0}', space=vmem, size = 0x10000, scoped, tag = 'input window, operand 1, single buffered']
    #allocation6 [shape = 's32[1]{0}', space=sflag, size = 0x4, scoped, tag = 'scoped memory for tpu_custom_call.1']
    #allocation7 [shape = 'u8[8192]{0}', space=vmem, size = 0x2000, scoped, tag = 'output window, operand 0, single buffered']
    %7 = vsyncpa [#allocation3], 0
    %8 = vsyncpa [#allocation6], 0
    %9 = vsyncpa [#allocation4], 0
    // Predicated region
    $region2: #{tpu_custom_call.1} parent=1 // pred_check
      _
    $region3: #{tpu_custom_call.1} parent=1 // pred_check_branch
      %11 = sbr.rel (0) target = $region5
    $region4: #{tpu_custom_call.1} parent=1 // pred_region
      %13 = vsyncadd [#allocation3], 0
      %s14 = sshll.u32 %s0, 4
      %s15 = int_to_ptr.hbm [resolvable:$true] %s14
      %s16 = sshll.u32 [#allocation2], 4
      %s17 = int_to_ptr.vmem [resolvable:$true] %s16
      %22 = dma.hbm_to_vmem [thread:$0]  %s15, 256, %s17, [#allocation3], 128, 128, 8
    $region5: #{tpu_custom_call.1} parent=1 // pred_fallthru
      _
    // Predicated region
    $region6: #{tpu_custom_call.1} parent=1 // pred_check
      _
    $region7: #{tpu_custom_call.1} parent=1 // pred_check_branch
      %24 = sbr.rel (0) target = $region9
    $region8: #{tpu_custom_call.1} parent=1 // pred_region
      %26 = vsyncadd [#allocation6], 0
      %s27 = sshll.u32 %s1, 4
      %s28 = int_to_ptr.hbm [resolvable:$true] %s27
      %s29 = sshll.u32 [#allocation5], 4
      %s30 = int_to_ptr.vmem [resolvable:$true] %s29
      %35 = dma.hbm_to_vmem [thread:$0]  %s28, 2048, %s30, [#allocation6], 128, 128, 8
    $region9: #{tpu_custom_call.1} parent=1 // pred_fallthru
      _
    // Predicated region
    $region10: #{tpu_custom_call.1} parent=1 // pred_check
      _
    $region11: #{tpu_custom_call.1} parent=1 // pred_check_branch
      %37 = sbr.rel (0) target = $region13
    $region12: #{tpu_custom_call.1} parent=1 // pred_region
      %39 = dma.done [#allocation3], 256
    $region13: #{tpu_custom_call.1} parent=1 // pred_fallthru
      _
    // Predicated region
    $region14: #{tpu_custom_call.1} parent=1 // pred_check
      _
    $region15: #{tpu_custom_call.1} parent=1 // pred_check_branch
      %41 = sbr.rel (0) target = $region17
    $region16: #{tpu_custom_call.1} parent=1 // pred_region
      %43 = dma.done [#allocation6], 2048
    $region17: #{tpu_custom_call.1} parent=1 // pred_fallthru
      _
    %v44 = vld [vmem:[#allocation2] sm:$0xff]
    %v45 = vld [vmem:[#allocation2 + $0x8] sm:$0xff]
    %v46 = vld [vmem:[#allocation5] sm:$0xff]
    %v47 = vld [vmem:[#allocation5 + $0x8] sm:$0xff]
    %v48 = vld [vmem:[#allocation5 + $0x10] sm:$0xff]
    %v49 = vld [vmem:[#allocation5 + $0x18] sm:$0xff]
    %v50 = vld [vmem:[#allocation5 + $0x20] sm:$0xff]
    %v51 = vld [vmem:[#allocation5 + $0x28] sm:$0xff]
    %v52 = vld [vmem:[#allocation5 + $0x30] sm:$0xff]
    %v53 = vld [vmem:[#allocation5 + $0x38] sm:$0xff]
    %v54 = vld [vmem:[#allocation5 + $0x40] sm:$0xff]
    %v55 = vld [vmem:[#allocation5 + $0x48] sm:$0xff]
    %v56 = vld [vmem:[#allocation5 + $0x50] sm:$0xff]
    %v57 = vld [vmem:[#allocation5 + $0x58] sm:$0xff]
    %v58 = vld [vmem:[#allocation5 + $0x60] sm:$0xff]
    %v59 = vld [vmem:[#allocation5 + $0x68] sm:$0xff]
    %v60 = vld [vmem:[#allocation5 + $0x70] sm:$0xff]
    %v61 = vld [vmem:[#allocation5 + $0x78] sm:$0xff]
    %62 = vmatpush.msra.mxu0 %v61
    %63 = vmatpush.msra.mxu0 %v60
    %64 = vmatpush.msra.mxu0 %v59
    %65 = vmatpush.msra.mxu0 %v58
    %66 = vmatpush.msra.mxu0 %v57
    %67 = vmatpush.msra.mxu0 %v56
    %68 = vmatpush.msra.mxu0 %v55
    %69 = vmatpush.msra.mxu0 %v54
    %70 = vmatpush.msra.mxu0 %v53
    %71 = vmatpush.msra.mxu0 %v52
    %72 = vmatpush.msra.mxu0 %v51
    %73 = vmatpush.msra.mxu0 %v50
    %74 = vmatpush.msra.mxu0 %v49
    %75 = vmatpush.msra.mxu0 %v48
    %76 = vmatpush.msra.mxu0 %v47
    %77 = vmatpush.msra.mxu0 %v46
    %78 = vmatmul.f32.gmra.mxu0 %v44
    %v79 = vpop.f32.mrf.mxu0
    %v80 = vadd.f32 0.0, %v79
    %81 = vmatmul.f32.gmra.mxu0 %v45
    %v82 = vpop.f32.mrf.mxu0
    %v83 = vadd.f32 0.0, %v82
    %84 = vdwg.mxu0
    %85 = vst [vmem:[#allocation7] sm:$0xff] %v80
    %86 = vst [vmem:[#allocation7 + $0x8] sm:$0xff] %v83
    // Predicated region
    $region18: #{tpu_custom_call.1} parent=1 // pred_check
      _
    $region19: #{tpu_custom_call.1} parent=1 // pred_check_branch
      %88 = sbr.rel (0) target = $region21
    $region20: #{tpu_custom_call.1} parent=1 // pred_region
      %90 = vsyncadd [#allocation4], 0
      %s91 = sshll.u32 [#allocation7], 4
      %s92 = int_to_ptr.vmem [resolvable:$true] %s91
      %s93 = sshll.u32 %s2, 4
      %s94 = int_to_ptr.hbm [resolvable:$true] %s93
      %99 = dma.vmem_to_hbm [thread:$0]  %s92, 256, %s94, [#allocation4], 128, 128, 8
    $region21: #{tpu_custom_call.1} parent=1 // pred_fallthru
      _
    // Predicated region
    $region22: #{tpu_custom_call.1} parent=1 // pred_check
      _
    $region23: #{tpu_custom_call.1} parent=1 // pred_check_branch
      %101 = sbr.rel (0) target = $region25
    $region24: #{tpu_custom_call.1} parent=1 // pred_region
      %103 = dma.done [#allocation4], 256
    $region25: #{tpu_custom_call.1} parent=1 // pred_fallthru
      _
    %104 = vsyncpa [#allocation3], 1
    %105 = vsyncpa [#allocation6], 1
    %106 = vsyncpa [#allocation4], 1

</llo_original>
